<compile_context>
chip_gen: v5e
topology: v5e:2x2
jax: 0.10.0
libtpu: 0.0.40
codegen_flags: <defaults>
</compile_context>

<pallas_src>
import functools

import jax
import jax.numpy as jnp
from jax.experimental import pallas as pl
from jax.experimental.pallas import tpu as pltpu


# ------------------------------ helpers ----------------------------------- #

def _round_up(a, b):
    return (a + b - 1) // b * b


def _apply_act(gate, activation):
    if activation == "silu":
        return gate * jax.nn.sigmoid(gate)
    if activation == "relu":
        return jnp.maximum(gate, 0.0)
    if activation == "gelu":
        # torch F.gelu default is exact (erf) GELU, not the tanh approximation.
        return jax.nn.gelu(gate, approximate=False)
    if activation == "sigmoid":
        return jax.nn.sigmoid(gate)
    return gate  # bilinear


# ----------------------------- Pallas kernel ------------------------------ #

def _moe_expert_kernel(ids_ref, cnt_ref,                 # SMEM scalar prefetch
                       x_ref, w1_ref, wd_ref, *rest,
                       fc, activation, has_lora):
    """One (token-tile i, expert-slot k, fe-chunk c) grid step."""
    if has_lora:
        la_ref, lb_ref, wr_ref, o_ref, acc_ref = rest
    else:
        wr_ref, o_ref, acc_ref = rest

    i = pl.program_id(0)
    k = pl.program_id(1)
    c = pl.program_id(2)

    @pl.when(jnp.logical_and(k == 0, c == 0))
    def _init():
        acc_ref[...] = jnp.zeros_like(acc_ref)

    # Padded (inactive) expert slots: skip all compute.  Their weight DMAs are
    # also skipped because the index_map repeats the previous block index.
    @pl.when(k < cnt_ref[i])
    def _compute():
        x = x_ref[...]                                       # [TN, H] bf16
        w_e = wr_ref[0]                                      # [TN, 1] f32 routing wt

        # x-side matmul against this chunk's [up_c | gate_c] -> [TN, 2*fc] f32.
        h_cat = jnp.dot(x, w1_ref[0], preferred_element_type=jnp.float32)
        up = h_cat[:, :fc]                                   # lane-aligned slices
        gate = h_cat[:, fc:]
        # Scale the narrow tensor (not the [TN, H] output) by the routing weight.
        hidden = (_apply_act(gate, activation) * up) * w_e   # [TN, fc] f32

        # Down-projection chunk, accumulated into the f32 scratch.
        acc_ref[...] += jnp.dot(hidden.astype(x.dtype), wd_ref[0],
                                preferred_element_type=jnp.float32)

        if has_lora:
            # LoRA is rank-small and fe-chunk independent: do it once per expert.
            @pl.when(c == 0)
            def _lora():
                xa = jnp.dot(x, la_ref[0],
                             preferred_element_type=jnp.float32) * w_e
                acc_ref[...] += jnp.dot(xa.astype(x.dtype), lb_ref[0],
                                        preferred_element_type=jnp.float32)

    @pl.when(jnp.logical_and(k == pl.num_programs(1) - 1,
                             c == pl.num_programs(2) - 1))
    def _finalize():
        o_ref[...] = acc_ref[...].astype(o_ref.dtype)


# ------------------------------- wrapper ----------------------------------- #

def sparse_mlp_with_lora(x, params, *, moe_topk, lora_scaling,
                         activation="silu", token_tile=256, fe_chunk=512,
                         vmem_limit_bytes=48 * 1024 * 1024):
    """Forward pass matching SparseMLPWithLoRA (rank=0, world_size=1)."""
    b, s, h = x.shape
    in_dtype = x.dtype
    x2 = x.reshape(-1, h)
    n_tok = x2.shape[0]

    up_w, gate_w, down_w = params["up"], params["gate"], params["down"]
    la, lb = params.get("lora_A"), params.get("lora_B")
    num_experts, _, fe = up_w.shape
    lora_r = 0 if la is None else la.shape[-1]
    has_lora = lora_r > 0
    E = num_experts

    # ---------------- routing (plain-JAX glue, tiny) ---------------- #
    logits = x2.astype(jnp.float32) @ params["gating"].astype(jnp.float32)
    probs = jax.nn.softmax(logits, axis=-1)
    topw, topi = jax.lax.top_k(probs, k=moe_topk)                     # [N, K]
    topw = topw / jnp.sum(topw, axis=-1, keepdims=True)
    rows = jnp.arange(n_tok)[:, None]
    dense_w = jnp.zeros((n_tok, E), jnp.float32).at[rows, topi].set(topw)
    sel = jnp.zeros((n_tok, E), jnp.int32).at[rows, topi].set(1)      # membership

    # ---------------- token tiling (keep >= 2 tiles for v7x megacore) -------- #
    tn = min(token_tile, _round_up(n_tok, 8))
    if _round_up(n_tok, tn) // tn < 2 and n_tok > 8:
        tn = _round_up((n_tok + 1) // 2, 8)
    n_pad = _round_up(n_tok, tn)
    n_tiles = n_pad // tn
    pad = n_pad - n_tok
    x_bf = jnp.pad(x2.astype(jnp.bfloat16), ((0, pad), (0, 0)))       # pad in bf16
    dw_p = jnp.pad(dense_w, ((0, pad), (0, 0)))
    sel_p = jnp.pad(sel, ((0, pad), (0, 0)))

    # --------- expert-ID compaction per token tile (skip weight DMA) --------- #
    active = sel_p.reshape(n_tiles, tn, E).max(axis=1)                # [T, E] 0/1
    counts = active.sum(axis=-1).astype(jnp.int32)                    # [T]
    order = jnp.argsort(1 - active, axis=-1).astype(jnp.int32)        # active first
    k_idx = jnp.arange(E, dtype=jnp.int32)[None, :]
    last_id = jnp.take_along_axis(order, jnp.maximum(counts - 1, 0)[:, None], 1)
    # Padded slots repeat the last active expert id -> same block index -> no DMA.
    ids = jnp.where(k_idx < jnp.maximum(counts[:, None], 1), order, last_id)
    ids = ids.astype(jnp.int32)                                       # [T, E]

    # Pre-gathered per-(slot, token) routing weights; zero for padded slots.
    dw_t = dw_p.reshape(n_tiles, tn, E)
    w_slot = jnp.take_along_axis(
        dw_t, jnp.broadcast_to(ids[:, None, :], (n_tiles, tn, E)), axis=2)
    w_slot = w_slot * (k_idx[:, None, :] < counts[:, None, None]).astype(jnp.float32)
    w_slot = w_slot.transpose(2, 0, 1).reshape(E, n_pad, 1)           # [E, Np, 1]

    # --------- bf16 expert weights, fe padded to 128-multiple and chunked ----- #
    fc = _round_up(min(fe_chunk, _round_up(fe, 128)), 128)
    fe_pad = _round_up(fe, fc)
    nc = fe_pad // fc
    pf = fe_pad - fe
    up_p = jnp.pad(up_w, ((0, 0), (0, 0), (0, pf))).astype(jnp.bfloat16)
    gate_p = jnp.pad(gate_w, ((0, 0), (0, 0), (0, pf))).astype(jnp.bfloat16)
    down_p = jnp.pad(down_w, ((0, 0), (0, pf), (0, 0))).astype(jnp.bfloat16)
    # Per-chunk layout [up_c | gate_c]: [E, H, nc*2*fc]
    w1 = jnp.concatenate([up_p.reshape(E, h, nc, fc),
                          gate_p.reshape(E, h, nc, fc)],
                         axis=-1).reshape(E, h, nc * 2 * fc)

    if has_lora:
        r_pad = _round_up(lora_r, 128)
        la_p = jnp.pad(la * lora_scaling,                             # fold scaling
                       ((0, 0), (0, 0), (0, r_pad - lora_r))).astype(jnp.bfloat16)
        lb_p = jnp.pad(lb, ((0, 0), (0, r_pad - lora_r), (0, 0))).astype(jnp.bfloat16)

    # ---------------------------- BlockSpecs ---------------------------- #
    def _freeze_chunk(i, k, c, cnt):
        # For padded slots freeze the chunk index so the block index equals the
        # previous step's index -> Pallas skips the weight DMA entirely.
        return jnp.where(k < cnt[i], c, nc - 1)

    def _w1_map(i, k, c, ids, cnt):
        return (ids[i, k], 0, _freeze_chunk(i, k, c, cnt))

    def _wd_map(i, k, c, ids, cnt):
        return (ids[i, k], _freeze_chunk(i, k, c, cnt), 0)

    def _expert_map(i, k, c, ids, cnt):
        return (ids[i, k], 0, 0)

    in_specs = [
        pl.BlockSpec((tn, h), lambda i, k, c, ids, cnt: (i, 0)),      # x (bf16)
        pl.BlockSpec((1, h, 2 * fc), _w1_map),                        # [up_c|gate_c]
        pl.BlockSpec((1, fc, h), _wd_map),                            # down chunk
    ]
    args = [ids, counts, x_bf, w1, down_p]
    if has_lora:
        in_specs += [pl.BlockSpec((1, h, r_pad), _expert_map),        # scaling*A
                     pl.BlockSpec((1, r_pad, h), _expert_map)]        # B
        args += [la_p, lb_p]
    in_specs.append(pl.BlockSpec((1, tn, 1),
                                 lambda i, k, c, ids, cnt: (k, i, 0)))  # slot weights
    args.append(w_slot)

    kernel = functools.partial(_moe_expert_kernel, fc=fc,
                               activation=activation, has_lora=has_lora)

    out = pl.pallas_call(
        kernel,
        out_shape=jax.ShapeDtypeStruct((n_pad, h), in_dtype),
        grid_spec=pltpu.PrefetchScalarGridSpec(
            num_scalar_prefetch=2,
            grid=(n_tiles, E, nc),
            in_specs=in_specs,
            out_specs=pl.BlockSpec((tn, h), lambda i, k, c, ids, cnt: (i, 0)),
            scratch_shapes=[pltpu.VMEM((tn, h), jnp.float32)],
        ),
        compiler_params=pltpu.CompilerParams(
            dimension_semantics=("parallel", "arbitrary", "arbitrary"),
            vmem_limit_bytes=vmem_limit_bytes),
    )(*args)

    return out[:n_tok].reshape(b, s, h)


# ----------------- reference (pure JAX, mirrors kernel quantization) -------- #

def sparse_mlp_reference(x, params, *, moe_topk, lora_scaling, activation="silu"):
    b, s, h = x.shape
    xf = x.reshape(-1, h).astype(jnp.float32)
    n_tok = xf.shape[0]
    num_experts = params["up"].shape[0]

    logits = xf @ params["gating"].astype(jnp.float32)
    probs = jax.nn.softmax(logits, axis=-1)
    topw, topi = jax.lax.top_k(probs, k=moe_topk)
    topw = topw / jnp.sum(topw, axis=-1, keepdims=True)
    dense_w = jnp.zeros((n_tok, num_experts), jnp.float32)
    dense_w = dense_w.at[jnp.arange(n_tok)[:, None], topi].set(topw)

    def q(v):  # bf16 round-trip, matching the kernel's casts
        return v.astype(jnp.bfloat16).astype(jnp.float32)

    xb = q(xf)
    out = jnp.zeros_like(xf)
    for e in range(num_experts):
        up = q(params["up"][e])
        gate = q(params["gate"][e])
        down = q(params["down"][e])
        u = xb @ up
        g = xb @ gate
        hidden = _apply_act(g, activation) * u
        w_e = dense_w[:, e:e + 1]
        out = out + q(hidden * w_e) @ down
        if params.get("lora_A") is not None:
            la = q(params["lora_A"][e] * lora_scaling)
            lbq = q(params["lora_B"][e])
            xa = (xb @ la) * w_e
            out = out + q(xa) @ lbq
    return out.astype(x.dtype).reshape(b, s, h)


# --------------------------------- main ------------------------------------ #

if __name__ == "__main__":
    # Module hyper-params (small, consistent with the reference module).
    batch, seq, hidden = 2, 8, 32
    ffh_size = 64
    num_experts = 4
    moe_topk = 2
    lora_rank = 4
    lora_alpha = 8.0
    lora_scaling = lora_alpha / lora_rank
    init_mean, init_std = 0.0, 1.0
    expert_size = ffh_size // num_experts

    key = jax.random.PRNGKey(0)
    ks = jax.random.split(key, 8)

    # Deterministic synthetic parameters (kaiming-like normal, fan_in scaling).
    def kaiming(k, shape, fan_in):
        return (jax.random.normal(k, shape, jnp.float32)
                * jnp.sqrt(2.0 / fan_in)).astype(jnp.float32)

    params = {
        "up":     kaiming(ks[0], (num_experts, hidden, expert_size), hidden),
        "gate":   kaiming(ks[1], (num_experts, hidden, expert_size), hidden),
        "down":   kaiming(ks[2], (num_experts, expert_size, hidden), expert_size),
        "lora_A": kaiming(ks[3], (num_experts, hidden, lora_rank), hidden),
        "lora_B": kaiming(ks[4], (num_experts, lora_rank, hidden), lora_rank),
        "gating": (init_mean
                   + init_std * jax.random.normal(ks[5], (hidden, num_experts),
                                                  jnp.float32)),
    }

    x = jax.random.normal(ks[6], (batch, seq, hidden), jnp.float32)

    # TODO(synk): lora dropout with rate > 0 (torch RNG) is not reproduced; the
    # module's default lora_dropout_rate=0.0 makes it an identity here.
    out = sparse_mlp_with_lora(x, params, moe_topk=moe_topk,
                               lora_scaling=lora_scaling, activation="silu")
    out = jax.block_until_ready(out)

    ref = sparse_mlp_reference(x, params, moe_topk=moe_topk,
                               lora_scaling=lora_scaling, activation="silu")
    assert out.shape == (batch, seq, hidden)
    assert jnp.allclose(out, ref, atol=1e-2, rtol=1e-2), "mismatch vs reference"

    print("KERNEL_OK")
</pallas_src>

<mosaic_0001>
module attributes {stable_mosaic.version = 11 : i64} {
  func.func @_moe_expert_kernel(%arg0: i32, %arg1: i32, %arg2: i32, %arg3: memref<2x4xi32, #tpu.memory_space<smem>>, %arg4: memref<2xi32, #tpu.memory_space<smem>>, %arg5: memref<8x32xbf16, #tpu.memory_space<vmem>>, %arg6: memref<1x32x256xbf16, #tpu.memory_space<vmem>>, %arg7: memref<1x128x32xbf16, #tpu.memory_space<vmem>>, %arg8: memref<1x32x128xbf16, #tpu.memory_space<vmem>>, %arg9: memref<1x128x32xbf16, #tpu.memory_space<vmem>>, %arg10: memref<1x8x1xf32, #tpu.memory_space<vmem>>, %arg11: memref<8x32xf32, #tpu.memory_space<vmem>>, %arg12: memref<8x32xf32, #tpu.memory_space<vmem>>) attributes {dimension_semantics = [#tpu.dimension_semantics<parallel>, #tpu.dimension_semantics<arbitrary>, #tpu.dimension_semantics<arbitrary>], iteration_bounds = array<i64: 2, 4, 1>, scalar_prefetch = 2 : i64, scratch_operands = 1 : i64, tpu.core_type = #tpu.core_type<tc>, window_params = [{transform_indices = @transform_0, window_bounds = array<i64: 8, 32>}, {transform_indices = @transform_1, window_bounds = array<i64: 1, 32, 256>}, {transform_indices = @transform_2, window_bounds = array<i64: 1, 128, 32>}, {transform_indices = @transform_3, window_bounds = array<i64: 1, 32, 128>}, {transform_indices = @transform_4, window_bounds = array<i64: 1, 128, 32>}, {transform_indices = @transform_5, window_bounds = array<i64: 1, 8, 1>}, {transform_indices = @transform_6, window_bounds = array<i64: 8, 32>}]} {
    %c0_i32 = arith.constant 0 : i32
    %0 = arith.cmpi eq, %arg1, %c0_i32 : i32
    %c0_i32_0 = arith.constant 0 : i32
    %1 = arith.cmpi eq, %arg2, %c0_i32_0 : i32
    %2 = arith.andi %0, %1 : i1
    %3 = arith.extui %2 : i1 to i32
    %c0_i32_1 = arith.constant 0 : i32
    %4 = arith.cmpi ne, %3, %c0_i32_1 : i32
    scf.if %4 {
      %cst = arith.constant 0.000000e+00 : f32
      %15 = vector.broadcast %cst : f32 to vector<8x32xf32>
      %c0 = arith.constant 0 : index
      %c0_5 = arith.constant 0 : index
      %16 = vector.load %arg12[%c0, %c0_5] : memref<8x32xf32, #tpu.memory_space<vmem>>, vector<8x32xf32>
      tpu.vector_store %arg12[%c0, %c0_5], %15 {strides = array<i32>} : memref<8x32xf32, #tpu.memory_space<vmem>>, vector<8x32xf32>,
    } else {
    }
    %5 = arith.index_cast %arg0 : i32 to index
    %6 = memref.load %arg4[%5] : memref<2xi32, #tpu.memory_space<smem>>
    %7 = arith.cmpi slt, %arg1, %6 : i32
    %8 = arith.extui %7 : i1 to i32
    %c0_i32_2 = arith.constant 0 : i32
    %9 = arith.cmpi ne, %8, %c0_i32_2 : i32
    scf.if %9 {
      %c0 = arith.constant 0 : index
      %c0_5 = arith.constant 0 : index
      %15 = vector.load %arg5[%c0, %c0_5] : memref<8x32xbf16, #tpu.memory_space<vmem>>, vector<8x32xbf16>
      %c0_6 = arith.constant 0 : index
      %c0_7 = arith.constant 0 : index
      %c0_8 = arith.constant 0 : index
      %16 = vector.load %arg10[%c0_6, %c0_7, %c0_8] : memref<1x8x1xf32, #tpu.memory_space<vmem>>, vector<1x8x1xf32>
      %17 = vector.shape_cast %16 : vector<1x8x1xf32> to vector<8x1xf32>
      %c0_9 = arith.constant 0 : index
      %c0_10 = arith.constant 0 : index
      %c0_11 = arith.constant 0 : index
      %18 = vector.load %arg6[%c0_9, %c0_10, %c0_11] : memref<1x32x256xbf16, #tpu.memory_space<vmem>>, vector<1x32x256xbf16>
      %19 = vector.shape_cast %18 : vector<1x32x256xbf16> to vector<32x256xbf16>
      %cst = arith.constant dense<0.000000e+00> : vector<8x256xf32>
      %20 = tpu.matmul %15, %19, %cst {dimension_numbers = #tpu.dot_dimension_numbers<[1], [0], [0], [1], [0, 0, 1, 1], [], []>} : vector<8x32xbf16>, vector<32x256xbf16>, vector<8x256xf32> -> vector<8x256xf32>
      %21 = vector.extract_strided_slice %20 {offsets = [0, 0], sizes = [8, 128], strides = [1, 1]} : vector<8x256xf32> to vector<8x128xf32>
      %22 = vector.extract_strided_slice %20 {offsets = [0, 128], sizes = [8, 128], strides = [1, 1]} : vector<8x256xf32> to vector<8x128xf32>
      %23 = arith.negf %22 : vector<8x128xf32>
      %24 = math.exp %23 : vector<8x128xf32>
      %cst_12 = arith.constant 1.000000e+00 : f32
      %25 = vector.broadcast %cst_12 : f32 to vector<8x128xf32>
      %26 = arith.addf %25, %24 : vector<8x128xf32>
      %27 = arith.divf %25, %26 : vector<8x128xf32>
      %28 = arith.mulf %22, %27 : vector<8x128xf32>
      %29 = arith.mulf %28, %21 : vector<8x128xf32>
      %30 = vector.broadcast %17 : vector<8x1xf32> to vector<8x128xf32>
      %31 = arith.mulf %29, %30 : vector<8x128xf32>
      %c0_13 = arith.constant 0 : index
      %c0_14 = arith.constant 0 : index
      %32 = vector.load %arg12[%c0_13, %c0_14] : memref<8x32xf32, #tpu.memory_space<vmem>>, vector<8x32xf32>
      %33 = arith.truncf %31 : vector<8x128xf32> to vector<8x128xbf16>
      %c0_15 = arith.constant 0 : index
      %c0_16 = arith.constant 0 : index
      %c0_17 = arith.constant 0 : index
      %34 = vector.load %arg7[%c0_15, %c0_16, %c0_17] : memref<1x128x32xbf16, #tpu.memory_space<vmem>>, vector<1x128x32xbf16>
      %35 = vector.shape_cast %34 : vector<1x128x32xbf16> to vector<128x32xbf16>
      %cst_18 = arith.constant dense<0.000000e+00> : vector<8x32xf32>
      %36 = tpu.matmul %33, %35, %cst_18 {dimension_numbers = #tpu.dot_dimension_numbers<[1], [0], [0], [1], [0, 0, 1, 1], [], []>} : vector<8x128xbf16>, vector<128x32xbf16>, vector<8x32xf32> -> vector<8x32xf32>
      %37 = arith.addf %32, %36 : vector<8x32xf32>
      %c0_19 = arith.constant 0 : index
      %c0_20 = arith.constant 0 : index
      %38 = vector.load %arg12[%c0_19, %c0_20] : memref<8x32xf32, #tpu.memory_space<vmem>>, vector<8x32xf32>
      tpu.vector_store %arg12[%c0_19, %c0_20], %37 {strides = array<i32>} : memref<8x32xf32, #tpu.memory_space<vmem>>, vector<8x32xf32>,
      %c0_i32_21 = arith.constant 0 : i32
      %39 = arith.cmpi eq, %arg2, %c0_i32_21 : i32
      %40 = arith.extui %39 : i1 to i32
      %c0_i32_22 = arith.constant 0 : i32
      %41 = arith.cmpi ne, %40, %c0_i32_22 : i32
      scf.if %41 {
        %c0_23 = arith.constant 0 : index
        %c0_24 = arith.constant 0 : index
        %c0_25 = arith.constant 0 : index
        %42 = vector.load %arg8[%c0_23, %c0_24, %c0_25] : memref<1x32x128xbf16, #tpu.memory_space<vmem>>, vector<1x32x128xbf16>
        %43 = vector.shape_cast %42 : vector<1x32x128xbf16> to vector<32x128xbf16>
        %cst_26 = arith.constant dense<0.000000e+00> : vector<8x128xf32>
        %44 = tpu.matmul %15, %43, %cst_26 {dimension_numbers = #tpu.dot_dimension_numbers<[1], [0], [0], [1], [0, 0, 1, 1], [], []>} : vector<8x32xbf16>, vector<32x128xbf16>, vector<8x128xf32> -> vector<8x128xf32>
        %45 = vector.broadcast %17 : vector<8x1xf32> to vector<8x128xf32>
        %46 = arith.mulf %44, %45 : vector<8x128xf32>
        %c0_27 = arith.constant 0 : index
        %c0_28 = arith.constant 0 : index
        %47 = vector.load %arg12[%c0_27, %c0_28] : memref<8x32xf32, #tpu.memory_space<vmem>>, vector<8x32xf32>
        %48 = arith.truncf %46 : vector<8x128xf32> to vector<8x128xbf16>
        %c0_29 = arith.constant 0 : index
        %c0_30 = arith.constant 0 : index
        %c0_31 = arith.constant 0 : index
        %49 = vector.load %arg9[%c0_29, %c0_30, %c0_31] : memref<1x128x32xbf16, #tpu.memory_space<vmem>>, vector<1x128x32xbf16>
        %50 = vector.shape_cast %49 : vector<1x128x32xbf16> to vector<128x32xbf16>
        %cst_32 = arith.constant dense<0.000000e+00> : vector<8x32xf32>
        %51 = tpu.matmul %48, %50, %cst_32 {dimension_numbers = #tpu.dot_dimension_numbers<[1], [0], [0], [1], [0, 0, 1, 1], [], []>} : vector<8x128xbf16>, vector<128x32xbf16>, vector<8x32xf32> -> vector<8x32xf32>
        %52 = arith.addf %47, %51 : vector<8x32xf32>
        %c0_33 = arith.constant 0 : index
        %c0_34 = arith.constant 0 : index
        %53 = vector.load %arg12[%c0_33, %c0_34] : memref<8x32xf32, #tpu.memory_space<vmem>>, vector<8x32xf32>
        tpu.vector_store %arg12[%c0_33, %c0_34], %52 {strides = array<i32>} : memref<8x32xf32, #tpu.memory_space<vmem>>, vector<8x32xf32>,
      } else {
      }
    } else {
    }
    %c3_i32 = arith.constant 3 : i32
    %10 = arith.cmpi eq, %arg1, %c3_i32 : i32
    %c0_i32_3 = arith.constant 0 : i32
    %11 = arith.cmpi eq, %arg2, %c0_i32_3 : i32
    %12 = arith.andi %10, %11 : i1
    %13 = arith.extui %12 : i1 to i32
    %c0_i32_4 = arith.constant 0 : i32
    %14 = arith.cmpi ne, %13, %c0_i32_4 : i32
    scf.if %14 {
      %c0 = arith.constant 0 : index
      %c0_5 = arith.constant 0 : index
      %15 = vector.load %arg12[%c0, %c0_5] : memref<8x32xf32, #tpu.memory_space<vmem>>, vector<8x32xf32>
      %c0_6 = arith.constant 0 : index
      %c0_7 = arith.constant 0 : index
      %16 = vector.load %arg11[%c0_6, %c0_7] : memref<8x32xf32, #tpu.memory_space<vmem>>, vector<8x32xf32>
      tpu.vector_store %arg11[%c0_6, %c0_7], %15 {strides = array<i32>} : memref<8x32xf32, #tpu.memory_space<vmem>>, vector<8x32xf32>,
    } else {
    }
    return
  }
  func.func @transform_0(%arg0: i32, %arg1: i32, %arg2: i32, %arg3: memref<2x4xi32, #tpu.memory_space<smem>>, %arg4: memref<2xi32, #tpu.memory_space<smem>>) -> (i32, i32) {
    %c0_i32 = arith.constant 0 : i32
    %c0_i32_0 = arith.constant 0 : i32
    return %arg0, %c0_i32 : i32, i32
  }
  func.func @transform_1(%arg0: i32, %arg1: i32, %arg2: i32, %arg3: memref<2x4xi32, #tpu.memory_space<smem>>, %arg4: memref<2xi32, #tpu.memory_space<smem>>) -> (i32, i32, i32) {
    %0 = arith.index_cast %arg0 : i32 to index
    %1 = arith.index_cast %arg1 : i32 to index
    %2 = memref.load %arg3[%0, %1] : memref<2x4xi32, #tpu.memory_space<smem>>
    %3 = arith.index_cast %arg0 : i32 to index
    %4 = memref.load %arg4[%3] : memref<2xi32, #tpu.memory_space<smem>>
    %5 = arith.cmpi slt, %arg1, %4 : i32
    %c0_i32 = arith.constant 0 : i32
    %6 = arith.select %5, %arg2, %c0_i32 : i32
    %c0_i32_0 = arith.constant 0 : i32
    %c0_i32_1 = arith.constant 0 : i32
    return %2, %c0_i32_0, %6 : i32, i32, i32
  }
  func.func @transform_2(%arg0: i32, %arg1: i32, %arg2: i32, %arg3: memref<2x4xi32, #tpu.memory_space<smem>>, %arg4: memref<2xi32, #tpu.memory_space<smem>>) -> (i32, i32, i32) {
    %0 = arith.index_cast %arg0 : i32 to index
    %1 = arith.index_cast %arg1 : i32 to index
    %2 = memref.load %arg3[%0, %1] : memref<2x4xi32, #tpu.memory_space<smem>>
    %3 = arith.index_cast %arg0 : i32 to index
    %4 = memref.load %arg4[%3] : memref<2xi32, #tpu.memory_space<smem>>
    %5 = arith.cmpi slt, %arg1, %4 : i32
    %c0_i32 = arith.constant 0 : i32
    %6 = arith.select %5, %arg2, %c0_i32 : i32
    %c0_i32_0 = arith.constant 0 : i32
    %c0_i32_1 = arith.constant 0 : i32
    return %2, %6, %c0_i32_0 : i32, i32, i32
  }
  func.func @transform_3(%arg0: i32, %arg1: i32, %arg2: i32, %arg3: memref<2x4xi32, #tpu.memory_space<smem>>, %arg4: memref<2xi32, #tpu.memory_space<smem>>) -> (i32, i32, i32) {
    %0 = arith.index_cast %arg0 : i32 to index
    %1 = arith.index_cast %arg1 : i32 to index
    %2 = memref.load %arg3[%0, %1] : memref<2x4xi32, #tpu.memory_space<smem>>
    %c0_i32 = arith.constant 0 : i32
    %c0_i32_0 = arith.constant 0 : i32
    %c0_i32_1 = arith.constant 0 : i32
    return %2, %c0_i32, %c0_i32_0 : i32, i32, i32
  }
  func.func @transform_4(%arg0: i32, %arg1: i32, %arg2: i32, %arg3: memref<2x4xi32, #tpu.memory_space<smem>>, %arg4: memref<2xi32, #tpu.memory_space<smem>>) -> (i32, i32, i32) {
    %0 = arith.index_cast %arg0 : i32 to index
    %1 = arith.index_cast %arg1 : i32 to index
    %2 = memref.load %arg3[%0, %1] : memref<2x4xi32, #tpu.memory_space<smem>>
    %c0_i32 = arith.constant 0 : i32
    %c0_i32_0 = arith.constant 0 : i32
    %c0_i32_1 = arith.constant 0 : i32
    return %2, %c0_i32, %c0_i32_0 : i32, i32, i32
  }
  func.func @transform_5(%arg0: i32, %arg1: i32, %arg2: i32, %arg3: memref<2x4xi32, #tpu.memory_space<smem>>, %arg4: memref<2xi32, #tpu.memory_space<smem>>) -> (i32, i32, i32) {
    %c0_i32 = arith.constant 0 : i32
    %c0_i32_0 = arith.constant 0 : i32
    return %arg1, %arg0, %c0_i32 : i32, i32, i32
  }
  func.func @transform_6(%arg0: i32, %arg1: i32, %arg2: i32, %arg3: memref<2x4xi32, #tpu.memory_space<smem>>, %arg4: memref<2xi32, #tpu.memory_space<smem>>) -> (i32, i32) {
    %c0_i32 = arith.constant 0 : i32
    %c0_i32_0 = arith.constant 0 : i32
    return %arg0, %c0_i32 : i32, i32
  }
}

</mosaic_0001>

<llo_original>
// kernel: tpu_custom_call.1
$region0: #{tpu_custom_call.1}
  #allocation0 [shape = 'u32[]', space=smem, size = 0x4, offset = 0x4, fixed_abs, tag = 'smem constant byte address 0x4 - core index']
  #allocation1 [shape = 'u32[72,128]{1,0:T(1,128)}', space=vmem, size = 0x9000, scoped, tag = 'internal scratch']
  #allocation2 [shape = 'f32[8,32]{1,0:T(8,128)}', space=vmem, size = 0x1000, scoped, tag = 'scratch operand']
  #allocation3 [shape = 's32[1]{0}', space=sflag, size = 0x4, scoped, tag = 'scoped memory for tpu_custom_call.1']
  #allocation4 [shape = 'u8[1024]{0}', space=smem, size = 0x400, scoped, tag = 'prefetched SMEM operand 0']
  #allocation5 [shape = 'u8[512]{0}', space=smem, size = 0x200, scoped, tag = 'prefetched SMEM operand 1']
  %s0 = inlined_call_operand.vmem [shape: s32[2,4], index: 0, kind: input, shape index: {}]
  %s1 = inlined_call_operand.vmem [shape: s32[2], index: 1, kind: input, shape index: {}]
  %s2 = inlined_call_operand.vmem [shape: bf16[16,32], index: 2, kind: input, shape index: {}]
  %s3 = inlined_call_operand.vmem [shape: bf16[4,32,256], index: 3, kind: input, shape index: {}]
  %s4 = inlined_call_operand.vmem [shape: bf16[4,128,32], index: 4, kind: input, shape index: {}]
  %s5 = inlined_call_operand.vmem [shape: bf16[4,32,128], index: 5, kind: input, shape index: {}]
  %s6 = inlined_call_operand.vmem [shape: bf16[4,128,32], index: 6, kind: input, shape index: {}]
  %s7 = inlined_call_operand.vmem [shape: f32[4,16,1], index: 7, kind: input, shape index: {}]
  %s8 = inlined_call_operand.hbm [shape: f32[16,32], index: 8, kind: output, shape index: {}]
  %s9 = sld [smem:[#allocation0]]
  $region73: #{tpu_custom_call.1} parent=0
    _
  %s11 = ssub.s32 1, %s9
  %s12 = scalar_select 0, %s11, %s9
  %s14 = sshll.u32 %s0, 4
  %s15 = int_to_ptr.vmem [resolvable:$true] %s14
  %17 = dma.vmem_to_smem %s15, 32, [#allocation4], [#allocation3]
  %s19 = sshll.u32 %s1, 4
  %s20 = int_to_ptr.vmem [resolvable:$true] %s19
  %22 = dma.vmem_to_smem %s20, 16, [#allocation5], [#allocation3]
  %24 = dma.done [#allocation3], 48
  %25 = sfence
  $region1: #{tpu_custom_call.1} parent=0
    #allocation6 [shape = 'u8[8192]{0}', space=vmem, size = 0x2000, scoped, tag = 'output window, operand 0']
    #allocation7 [shape = 's32[2]{0}', space=sflag, size = 0x8, scoped, tag = 'scoped memory for tpu_custom_call.1']
    %26 = vsyncpa [#allocation7], 0
    %s27 = scalar_lea.sflag [#allocation7], 1
    %28 = vsyncpa %s27, 0
    loop: start=0, step=1, limit=10
    $region2: #{tpu_custom_call.1} parent=1 // loop_pre_header
      _
    $region3: #{tpu_custom_call.1} parent=1 // loop_header
      %s30 = sphi 0, %s34
      %p31 = scmp.ge.s32.totalorder %s30, 10
      %s37 = sphi 0, %s56
      %s38 = sphi 0, %s52
      %s39 = sphi 0, %s48
      %s40 = sphi 0, %s37
      %s41 = sphi 0, %s38
      %s42 = sphi 0, %s39
      %s43 = sphi 0, %s40
      %s44 = sphi 0, %s41
      %s45 = sphi 0, %s42
      %s59 = sphi 0, %s61
      %s62 = sphi 0, %s59
      %s63 = sphi 0, %s62
      %s79 = sphi 0, %s63
      %s109 = sphi 0, %s111
      %s112 = sphi 0, %s109
      %s113 = sphi 0, %s112
      %s129 = sphi 0, %s113
      %s159 = sphi 0, %s161
      %s162 = sphi 0, %s159
      %s163 = sphi 0, %s162
      %s179 = sphi 0, %s163
      %s201 = sphi 0, %s203
      %s204 = sphi 0, %s201
      %s205 = sphi 0, %s204
      %s221 = sphi 0, %s205
      %s243 = sphi 0, %s245
      %s246 = sphi 0, %s243
      %s247 = sphi 0, %s246
      %s263 = sphi 0, %s247
      %s271 = sphi 0, %s273
      %s274 = sphi 0, %s271
      %s275 = sphi 0, %s274
      %s291 = sphi 0, %s275
      %s297 = sphi 0, %s299
      %s300 = sphi 0, %s297
      %s301 = sphi 0, %s300
      %s317 = sphi 0, %s301
    $region4: #{tpu_custom_call.1} parent=1 // loop_header_branch
      %33 = sbr.rel (%p31) target = $region8
    $region5: #{tpu_custom_call.1} parent=1 // loop_body
      %s35 = ssub.s32 %s30, 1
      %s36 = ssub.s32 %s30, 2
      %s46 = sadd.s32 1, %s39
      %p47 = scmp.ge.s32.totalorder %s46, 1
      %s48 = scalar_select %p47, 0, %s46
      %s49 = sadd.s32 1, %s38
      %s50 = scalar_select %p47, %s49, %s38
      %p51 = scmp.ge.s32.totalorder %s50, 4
      %s52 = scalar_select %p51, 0, %s50
      %s53 = sadd.s32 1, %s37
      %s54 = scalar_select %p51, %s53, %s37
      %p55 = scmp.ge.s32.totalorder %s54, 2
      %s56 = scalar_select %p55, 0, %s54
      %s57 = ssub.s32 %s37, %s56
      %p58 = scmp.eq.s32.totalorder %s57, 0
      %s60 = sadd.s32 %s59, 1
      %s61 = scalar_select %p58, %s59, %s60
      %p64 = pneg %p58
      %p65 = scmp.eq.s32.totalorder %s30, 7
      %p66 = por %p64, %p65
      %p67 = scmp.ne.s32.totalorder %s59, %s62
      %p68 = scmp.eq.s32.totalorder %s30, 0
      %p69 = por %p67, %p68
      %p70 = scmp.ne.s32.totalorder %s59, %s62
      %p71 = scmp.eq.s32.totalorder %s35, 7
      %p72 = por %p70, %p71
      %p73 = scmp.ne.s32.totalorder %s62, %s63
      %p74 = scmp.eq.s32.totalorder %s35, 0
      %p75 = por %p73, %p74
      %p76 = scmp.ne.s32.totalorder %s62, %s63
      %p77 = scmp.eq.s32.totalorder %s36, 7
      %p78 = por %p76, %p77
      %p80 = scmp.ne.s32.totalorder %s63, %s79
      %p81 = scmp.eq.s32.totalorder %s36, 0
      %p82 = por %p80, %p81
      %s83 = sshra.s32 %s38, 7
      %s84 = sand.u32 %s38, 127
      %s85 = sadd.s32 %s83, %s37
      %s86 = smul.u32 %s85, 128
      %s87 = sshra.s32 %s38, 7
      %s88 = sand.u32 %s38, 127
      %s89 = sadd.s32 %s86, %s88
      %s90 = sld [smem:[#allocation4 + %s89]]
      %s91 = sld [smem:[#allocation5 + %s37]]
      %p92 = scmp.lt.s32.totalorder %s38, %s91
      %s93 = scalar_select %p92, %s39, 0
      %s94 = sshra.s32 %s52, 7
      %s95 = sand.u32 %s52, 127
      %s96 = sadd.s32 %s94, %s56
      %s97 = smul.u32 %s96, 128
      %s98 = sshra.s32 %s52, 7
      %s99 = sand.u32 %s52, 127
      %s100 = sadd.s32 %s97, %s99
      %s101 = sld [smem:[#allocation4 + %s100]]
      %s102 = sld [smem:[#allocation5 + %s56]]
      %p103 = scmp.lt.s32.totalorder %s52, %s102
      %s104 = scalar_select %p103, %s48, 0
      %s105 = ssub.s32 %s90, %s101
      %s106 = ssub.s32 %s93, %s104
      %s107 = sor.u32 %s105, %s106
      %p108 = scmp.eq.s32.totalorder %s107, 0
      %s110 = sadd.s32 %s109, 1
      %s111 = scalar_select %p108, %s109, %s110
      %p114 = pneg %p108
      %p115 = scmp.eq.s32.totalorder %s30, 7
      %p116 = por %p114, %p115
      %p117 = scmp.ne.s32.totalorder %s109, %s112
      %p118 = scmp.eq.s32.totalorder %s30, 0
      %p119 = por %p117, %p118
      %p120 = scmp.ne.s32.totalorder %s109, %s112
      %p121 = scmp.eq.s32.totalorder %s35, 7
      %p122 = por %p120, %p121
      %p123 = scmp.ne.s32.totalorder %s112, %s113
      %p124 = scmp.eq.s32.totalorder %s35, 0
      %p125 = por %p123, %p124
      %p126 = scmp.ne.s32.totalorder %s112, %s113
      %p127 = scmp.eq.s32.totalorder %s36, 7
      %p128 = por %p126, %p127
      %p130 = scmp.ne.s32.totalorder %s113, %s129
      %p131 = scmp.eq.s32.totalorder %s36, 0
      %p132 = por %p130, %p131
      %s133 = sshra.s32 %s38, 7
      %s134 = sand.u32 %s38, 127
      %s135 = sadd.s32 %s133, %s37
      %s136 = smul.u32 %s135, 128
      %s137 = sshra.s32 %s38, 7
      %s138 = sand.u32 %s38, 127
      %s139 = sadd.s32 %s136, %s138
      %s140 = sld [smem:[#allocation4 + %s139]]
      %s141 = sld [smem:[#allocation5 + %s37]]
      %p142 = scmp.lt.s32.totalorder %s38, %s141
      %s143 = scalar_select %p142, %s39, 0
      %s144 = sshra.s32 %s52, 7
      %s145 = sand.u32 %s52, 127
      %s146 = sadd.s32 %s144, %s56
      %s147 = smul.u32 %s146, 128
      %s148 = sshra.s32 %s52, 7
      %s149 = sand.u32 %s52, 127
      %s150 = sadd.s32 %s147, %s149
      %s151 = sld [smem:[#allocation4 + %s150]]
      %s152 = sld [smem:[#allocation5 + %s56]]
      %p153 = scmp.lt.s32.totalorder %s52, %s152
      %s154 = scalar_select %p153, %s48, 0
      %s155 = ssub.s32 %s140, %s151
      %s156 = ssub.s32 %s143, %s154
      %s157 = sor.u32 %s155, %s156
      %p158 = scmp.eq.s32.totalorder %s157, 0
      %s160 = sadd.s32 %s159, 1
      %s161 = scalar_select %p158, %s159, %s160
      %p164 = pneg %p158
      %p165 = scmp.eq.s32.totalorder %s30, 7
      %p166 = por %p164, %p165
      %p167 = scmp.ne.s32.totalorder %s159, %s162
      %p168 = scmp.eq.s32.totalorder %s30, 0
      %p169 = por %p167, %p168
      %p170 = scmp.ne.s32.totalorder %s159, %s162
      %p171 = scmp.eq.s32.totalorder %s35, 7
      %p172 = por %p170, %p171
      %p173 = scmp.ne.s32.totalorder %s162, %s163
      %p174 = scmp.eq.s32.totalorder %s35, 0
      %p175 = por %p173, %p174
      %p176 = scmp.ne.s32.totalorder %s162, %s163
      %p177 = scmp.eq.s32.totalorder %s36, 7
      %p178 = por %p176, %p177
      %p180 = scmp.ne.s32.totalorder %s163, %s179
      %p181 = scmp.eq.s32.totalorder %s36, 0
      %p182 = por %p180, %p181
      %s183 = sshra.s32 %s38, 7
      %s184 = sand.u32 %s38, 127
      %s185 = sadd.s32 %s183, %s37
      %s186 = smul.u32 %s185, 128
      %s187 = sshra.s32 %s38, 7
      %s188 = sand.u32 %s38, 127
      %s189 = sadd.s32 %s186, %s188
      %s190 = sld [smem:[#allocation4 + %s189]]
      %s191 = sshra.s32 %s52, 7
      %s192 = sand.u32 %s52, 127
      %s193 = sadd.s32 %s191, %s56
      %s194 = smul.u32 %s193, 128
      %s195 = sshra.s32 %s52, 7
      %s196 = sand.u32 %s52, 127
      %s197 = sadd.s32 %s194, %s196
      %s198 = sld [smem:[#allocation4 + %s197]]
      %s199 = ssub.s32 %s190, %s198
      %p200 = scmp.eq.s32.totalorder %s199, 0
      %s202 = sadd.s32 %s201, 1
      %s203 = scalar_select %p200, %s201, %s202
      %p206 = pneg %p200
      %p207 = scmp.eq.s32.totalorder %s30, 7
      %p208 = por %p206, %p207
      %p209 = scmp.ne.s32.totalorder %s201, %s204
      %p210 = scmp.eq.s32.totalorder %s30, 0
      %p211 = por %p209, %p210
      %p212 = scmp.ne.s32.totalorder %s201, %s204
      %p213 = scmp.eq.s32.totalorder %s35, 7
      %p214 = por %p212, %p213
      %p215 = scmp.ne.s32.totalorder %s204, %s205
      %p216 = scmp.eq.s32.totalorder %s35, 0
      %p217 = por %p215, %p216
      %p218 = scmp.ne.s32.totalorder %s204, %s205
      %p219 = scmp.eq.s32.totalorder %s36, 7
      %p220 = por %p218, %p219
      %p222 = scmp.ne.s32.totalorder %s205, %s221
      %p223 = scmp.eq.s32.totalorder %s36, 0
      %p224 = por %p222, %p223
      %s225 = sshra.s32 %s38, 7
      %s226 = sand.u32 %s38, 127
      %s227 = sadd.s32 %s225, %s37
      %s228 = smul.u32 %s227, 128
      %s229 = sshra.s32 %s38, 7
      %s230 = sand.u32 %s38, 127
      %s231 = sadd.s32 %s228, %s230
      %s232 = sld [smem:[#allocation4 + %s231]]
      %s233 = sshra.s32 %s52, 7
      %s234 = sand.u32 %s52, 127
      %s235 = sadd.s32 %s233, %s56
      %s236 = smul.u32 %s235, 128
      %s237 = sshra.s32 %s52, 7
      %s238 = sand.u32 %s52, 127
      %s239 = sadd.s32 %s236, %s238
      %s240 = sld [smem:[#allocation4 + %s239]]
      %s241 = ssub.s32 %s232, %s240
      %p242 = scmp.eq.s32.totalorder %s241, 0
      %s244 = sadd.s32 %s243, 1
      %s245 = scalar_select %p242, %s243, %s244
      %p248 = pneg %p242
      %p249 = scmp.eq.s32.totalorder %s30, 7
      %p250 = por %p248, %p249
      %p251 = scmp.ne.s32.totalorder %s243, %s246
      %p252 = scmp.eq.s32.totalorder %s30, 0
      %p253 = por %p251, %p252
      %p254 = scmp.ne.s32.totalorder %s243, %s246
      %p255 = scmp.eq.s32.totalorder %s35, 7
      %p256 = por %p254, %p255
      %p257 = scmp.ne.s32.totalorder %s246, %s247
      %p258 = scmp.eq.s32.totalorder %s35, 0
      %p259 = por %p257, %p258
      %p260 = scmp.ne.s32.totalorder %s246, %s247
      %p261 = scmp.eq.s32.totalorder %s36, 7
      %p262 = por %p260, %p261
      %p264 = scmp.ne.s32.totalorder %s247, %s263
      %p265 = scmp.eq.s32.totalorder %s36, 0
      %p266 = por %p264, %p265
      %s267 = ssub.s32 %s38, %s52
      %s268 = ssub.s32 %s37, %s56
      %s269 = sor.u32 %s267, %s268
      %p270 = scmp.eq.s32.totalorder %s269, 0
      %s272 = sadd.s32 %s271, 1
      %s273 = scalar_select %p270, %s271, %s272
      %p276 = pneg %p270
      %p277 = scmp.eq.s32.totalorder %s30, 7
      %p278 = por %p276, %p277
      %p279 = scmp.ne.s32.totalorder %s271, %s274
      %p280 = scmp.eq.s32.totalorder %s30, 0
      %p281 = por %p279, %p280
      %p282 = scmp.ne.s32.totalorder %s271, %s274
      %p283 = scmp.eq.s32.totalorder %s35, 7
      %p284 = por %p282, %p283
      %p285 = scmp.ne.s32.totalorder %s274, %s275
      %p286 = scmp.eq.s32.totalorder %s35, 0
      %p287 = por %p285, %p286
      %p288 = scmp.ne.s32.totalorder %s274, %s275
      %p289 = scmp.eq.s32.totalorder %s36, 7
      %p290 = por %p288, %p289
      %p292 = scmp.ne.s32.totalorder %s275, %s291
      %p293 = scmp.eq.s32.totalorder %s36, 0
      %p294 = por %p292, %p293
      %s295 = ssub.s32 %s37, %s56
      %p296 = scmp.eq.s32.totalorder %s295, 0
      %s298 = sadd.s32 %s297, 1
      %s299 = scalar_select %p296, %s297, %s298
      %p302 = pneg %p296
      %p303 = scmp.eq.s32.totalorder %s30, 7
      %p304 = por %p302, %p303
      %p305 = scmp.ne.s32.totalorder %s297, %s300
      %p306 = scmp.eq.s32.totalorder %s30, 0
      %p307 = por %p305, %p306
      %p308 = scmp.ne.s32.totalorder %s297, %s300
      %p309 = scmp.eq.s32.totalorder %s35, 7
      %p310 = por %p308, %p309
      %p311 = scmp.ne.s32.totalorder %s300, %s301
      %p312 = scmp.eq.s32.totalorder %s35, 0
      %p313 = por %p311, %p312
      %p314 = scmp.ne.s32.totalorder %s300, %s301
      %p315 = scmp.eq.s32.totalorder %s36, 7
      %p316 = por %p314, %p315
      %p318 = scmp.ne.s32.totalorder %s301, %s317
      %p319 = scmp.eq.s32.totalorder %s36, 0
      %p320 = por %p318, %p319
      %p321 = scmp.le.s32.totalorder 1, %s30
      %p322 = scmp.lt.s32.totalorder %s30, 9
      %p323 = pnand %p321, %p322
      %p324 = pneg %p323
      // Predicated region
      $region9: #{tpu_custom_call.1} parent=5 // pred_check
        _
      $region10: #{tpu_custom_call.1} parent=5 // pred_check_branch
        %326 = sbr.rel (%p323) target = $region12
      $region11: #{tpu_custom_call.1} parent=5 // pred_region
        %s327 = ssub.s32 %s30, 1
      $region12: #{tpu_custom_call.1} parent=5 // pred_fallthru
        _
      %p328 = scmp.lt.s32.totalorder %s30, 8
      // Predicated region
      $region13: #{tpu_custom_call.1} parent=5 // pred_check
        %p329 = pneg %p328
      $region14: #{tpu_custom_call.1} parent=5 // pred_check_branch
        %331 = sbr.rel (%p329) target = $region16
      $region15: #{tpu_custom_call.1} parent=5 // pred_region
        // Predicated region
        $region17: #{tpu_custom_call.1} parent=15 // pred_check
          %p332 = pneg %p69
        $region18: #{tpu_custom_call.1} parent=15 // pred_check_branch
          %334 = sbr.rel (%p332) target = $region20
        $region19: #{tpu_custom_call.1} parent=15 // pred_region
          %p335 = scmp.lt.s32.totalorder %s37, 1
          %s336 = scalar_select %p335, %s37, 1
          %s337 = smul.addr %s336, 4
          %s338 = scalar_lea.vmem %s2, %s337
        $region20: #{tpu_custom_call.1} parent=15 // pred_fallthru
          _
        // Predicated region
        $region21: #{tpu_custom_call.1} parent=15 // pred_check
          %p339 = pneg %p119
        $region22: #{tpu_custom_call.1} parent=15 // pred_check_branch
          %341 = sbr.rel (%p339) target = $region24
        $region23: #{tpu_custom_call.1} parent=15 // pred_region
          %s342 = sshra.s32 %s38, 7
          %s343 = sand.u32 %s38, 127
          %s344 = sadd.s32 %s342, %s37
          %s345 = smul.u32 %s344, 128
          %s346 = sshra.s32 %s38, 7
          %s347 = sand.u32 %s38, 127
          %s348 = sadd.s32 %s345, %s347
          %s349 = sld [smem:[#allocation4 + %s348]]
          %s350 = sld [smem:[#allocation5 + %s37]]
          %p351 = scmp.lt.s32.totalorder %s38, %s350
          %s352 = scalar_select %p351, %s39, 0
          %s353 = smul.u32 2, %s352
          %p354 = scmp.lt.s32.totalorder %s349, 3
          %s355 = scalar_select %p354, %s349, 3
          %p356 = scmp.lt.s32.totalorder %s353, 1
          %s357 = scalar_select %p356, %s353, 1
          %s358 = smul.addr %s355, 8
          %s359 = sadd.s32 %s357, %s358
          %s360 = smul.addr %s359, 4
          %s361 = scalar_lea.vmem %s3, %s360
          %s362 = sshra.s32 %s38, 7
          %s363 = sand.u32 %s38, 127
          %s364 = sadd.s32 %s362, %s37
          %s365 = smul.u32 %s364, 128
          %s366 = sshra.s32 %s38, 7
          %s367 = sand.u32 %s38, 127
          %s368 = sadd.s32 %s365, %s367
          %s369 = sld [smem:[#allocation4 + %s368]]
          %s370 = sld [smem:[#allocation5 + %s37]]
          %p371 = scmp.lt.s32.totalorder %s38, %s370
          %s372 = scalar_select %p371, %s39, 0
          %s373 = smul.u32 2, %s372
        $region24: #{tpu_custom_call.1} parent=15 // pred_fallthru
          _
        // Predicated region
        $region25: #{tpu_custom_call.1} parent=15 // pred_check
          %p374 = pneg %p169
        $region26: #{tpu_custom_call.1} parent=15 // pred_check_branch
          %376 = sbr.rel (%p374) target = $region28
        $region27: #{tpu_custom_call.1} parent=15 // pred_region
          %s377 = sshra.s32 %s38, 7
          %s378 = sand.u32 %s38, 127
          %s379 = sadd.s32 %s377, %s37
          %s380 = smul.u32 %s379, 128
          %s381 = sshra.s32 %s38, 7
          %s382 = sand.u32 %s38, 127
          %s383 = sadd.s32 %s380, %s382
          %s384 = sld [smem:[#allocation4 + %s383]]
          %s385 = sld [smem:[#allocation5 + %s37]]
          %p386 = scmp.lt.s32.totalorder %s38, %s385
          %s387 = scalar_select %p386, %s39, 0
          %s388 = smul.u32 16, %s387
          %p389 = scmp.lt.s32.totalorder %s384, 3
          %s390 = scalar_select %p389, %s384, 3
          %p391 = scmp.lt.s32.totalorder %s388, 15
          %s392 = scalar_select %p391, %s388, 15
          %s393 = smul.addr %s390, 16
          %s394 = sadd.s32 %s392, %s393
          %s395 = smul.addr %s394, 4
          %s396 = scalar_lea.vmem %s4, %s395
          %s397 = sshra.s32 %s38, 7
          %s398 = sand.u32 %s38, 127
          %s399 = sadd.s32 %s397, %s37
          %s400 = smul.u32 %s399, 128
          %s401 = sshra.s32 %s38, 7
          %s402 = sand.u32 %s38, 127
          %s403 = sadd.s32 %s400, %s402
          %s404 = sld [smem:[#allocation4 + %s403]]
          %s405 = sld [smem:[#allocation5 + %s37]]
          %p406 = scmp.lt.s32.totalorder %s38, %s405
          %s407 = scalar_select %p406, %s39, 0
          %s408 = smul.u32 16, %s407
        $region28: #{tpu_custom_call.1} parent=15 // pred_fallthru
          _
        // Predicated region
        $region29: #{tpu_custom_call.1} parent=15 // pred_check
          %p409 = pneg %p211
        $region30: #{tpu_custom_call.1} parent=15 // pred_check_branch
          %411 = sbr.rel (%p409) target = $region32
        $region31: #{tpu_custom_call.1} parent=15 // pred_region
          %s412 = sshra.s32 %s38, 7
          %s413 = sand.u32 %s38, 127
          %s414 = sadd.s32 %s412, %s37
          %s415 = smul.u32 %s414, 128
          %s416 = sshra.s32 %s38, 7
          %s417 = sand.u32 %s38, 127
          %s418 = sadd.s32 %s415, %s417
          %s419 = sld [smem:[#allocation4 + %s418]]
          %p420 = scmp.lt.s32.totalorder %s419, 3
          %s421 = scalar_select %p420, %s419, 3
          %s422 = smul.addr %s421, 4
          %s423 = smul.addr %s422, 4
          %s424 = scalar_lea.vmem %s5, %s423
          %s425 = sshra.s32 %s38, 7
          %s426 = sand.u32 %s38, 127
          %s427 = sadd.s32 %s425, %s37
          %s428 = smul.u32 %s427, 128
          %s429 = sshra.s32 %s38, 7
          %s430 = sand.u32 %s38, 127
          %s431 = sadd.s32 %s428, %s430
          %s432 = sld [smem:[#allocation4 + %s431]]
        $region32: #{tpu_custom_call.1} parent=15 // pred_fallthru
          _
        // Predicated region
        $region33: #{tpu_custom_call.1} parent=15 // pred_check
          %p433 = pneg %p253
        $region34: #{tpu_custom_call.1} parent=15 // pred_check_branch
          %435 = sbr.rel (%p433) target = $region36
        $region35: #{tpu_custom_call.1} parent=15 // pred_region
          %s436 = sshra.s32 %s38, 7
          %s437 = sand.u32 %s38, 127
          %s438 = sadd.s32 %s436, %s37
          %s439 = smul.u32 %s438, 128
          %s440 = sshra.s32 %s38, 7
          %s441 = sand.u32 %s38, 127
          %s442 = sadd.s32 %s439, %s441
          %s443 = sld [smem:[#allocation4 + %s442]]
          %p444 = scmp.lt.s32.totalorder %s443, 3
          %s445 = scalar_select %p444, %s443, 3
          %s446 = smul.addr %s445, 16
          %s447 = smul.addr %s446, 4
          %s448 = scalar_lea.vmem %s6, %s447
          %s449 = sshra.s32 %s38, 7
          %s450 = sand.u32 %s38, 127
          %s451 = sadd.s32 %s449, %s37
          %s452 = smul.u32 %s451, 128
          %s453 = sshra.s32 %s38, 7
          %s454 = sand.u32 %s38, 127
          %s455 = sadd.s32 %s452, %s454
          %s456 = sld [smem:[#allocation4 + %s455]]
        $region36: #{tpu_custom_call.1} parent=15 // pred_fallthru
          _
        // Predicated region
        $region37: #{tpu_custom_call.1} parent=15 // pred_check
          %p457 = pneg %p281
        $region38: #{tpu_custom_call.1} parent=15 // pred_check_branch
          %459 = sbr.rel (%p457) target = $region40
        $region39: #{tpu_custom_call.1} parent=15 // pred_region
          %p460 = scmp.lt.s32.totalorder %s38, 3
          %s461 = scalar_select %p460, %s38, 3
          %p462 = scmp.lt.s32.totalorder %s37, 1
          %s463 = scalar_select %p462, %s37, 1
          %s464 = smul.addr %s461, 2
          %s465 = sadd.s32 %s463, %s464
          %s466 = smul.addr %s465, 8
          %s467 = scalar_lea.vmem %s7, %s466
        $region40: #{tpu_custom_call.1} parent=15 // pred_fallthru
          _
      $region16: #{tpu_custom_call.1} parent=5 // pred_fallthru
        _
      %p468 = scmp.le.s32.totalorder 1, %s30
      %p469 = scmp.lt.s32.totalorder %s30, 9
      %p470 = pnand %p468, %p469
      %p471 = pneg %p470
      // Predicated region
      $region41: #{tpu_custom_call.1} parent=5 // pred_check
        _
      $region42: #{tpu_custom_call.1} parent=5 // pred_check_branch
        %473 = sbr.rel (%p470) target = $region44
      $region43: #{tpu_custom_call.1} parent=5 // pred_region
        %s474 = ssub.s32 %s30, 1
        %p475 = scmp.lt.s32.totalorder %s40, 1
        %s476 = scalar_select %p475, %s40, 1
        %s477 = smul.addr %s476, 4
        %s478 = scalar_lea.vmem %s2, %s477
        %p479 = pneg %p75
        %p480 = pneg %p72
        %s481 = sshra.s32 %s41, 7
        %s482 = sand.u32 %s41, 127
        %s483 = sadd.s32 %s481, %s40
        %s484 = smul.u32 %s483, 128
        %s485 = sshra.s32 %s41, 7
        %s486 = sand.u32 %s41, 127
        %s487 = sadd.s32 %s484, %s486
        %s488 = sld [smem:[#allocation4 + %s487]]
        %s489 = sld [smem:[#allocation5 + %s40]]
        %p490 = scmp.lt.s32.totalorder %s41, %s489
        %s491 = scalar_select %p490, %s42, 0
        %s492 = smul.u32 2, %s491
        %p493 = scmp.lt.s32.totalorder %s488, 3
        %s494 = scalar_select %p493, %s488, 3
        %p495 = scmp.lt.s32.totalorder %s492, 1
        %s496 = scalar_select %p495, %s492, 1
        %s497 = smul.addr %s494, 8
        %s498 = sadd.s32 %s496, %s497
        %s499 = smul.addr %s498, 4
        %s500 = scalar_lea.vmem %s3, %s499
        %p501 = pneg %p125
        %p502 = pneg %p122
        %s503 = sshra.s32 %s41, 7
        %s504 = sand.u32 %s41, 127
        %s505 = sadd.s32 %s503, %s40
        %s506 = smul.u32 %s505, 128
        %s507 = sshra.s32 %s41, 7
        %s508 = sand.u32 %s41, 127
        %s509 = sadd.s32 %s506, %s508
        %s510 = sld [smem:[#allocation4 + %s509]]
        %s511 = sld [smem:[#allocation5 + %s40]]
        %p512 = scmp.lt.s32.totalorder %s41, %s511
        %s513 = scalar_select %p512, %s42, 0
        %s514 = smul.u32 16, %s513
        %p515 = scmp.lt.s32.totalorder %s510, 3
        %s516 = scalar_select %p515, %s510, 3
        %p517 = scmp.lt.s32.totalorder %s514, 15
        %s518 = scalar_select %p517, %s514, 15
        %s519 = smul.addr %s516, 16
        %s520 = sadd.s32 %s518, %s519
        %s521 = smul.addr %s520, 4
        %s522 = scalar_lea.vmem %s4, %s521
        %p523 = pneg %p175
        %p524 = pneg %p172
        %s525 = sshra.s32 %s41, 7
        %s526 = sand.u32 %s41, 127
        %s527 = sadd.s32 %s525, %s40
        %s528 = smul.u32 %s527, 128
        %s529 = sshra.s32 %s41, 7
        %s530 = sand.u32 %s41, 127
        %s531 = sadd.s32 %s528, %s530
        %s532 = sld [smem:[#allocation4 + %s531]]
        %p533 = scmp.lt.s32.totalorder %s532, 3
        %s534 = scalar_select %p533, %s532, 3
        %s535 = smul.addr %s534, 4
        %s536 = smul.addr %s535, 4
        %s537 = scalar_lea.vmem %s5, %s536
        %p538 = pneg %p217
        %p539 = pneg %p214
        %s540 = sshra.s32 %s41, 7
        %s541 = sand.u32 %s41, 127
        %s542 = sadd.s32 %s540, %s40
        %s543 = smul.u32 %s542, 128
        %s544 = sshra.s32 %s41, 7
        %s545 = sand.u32 %s41, 127
        %s546 = sadd.s32 %s543, %s545
        %s547 = sld [smem:[#allocation4 + %s546]]
        %p548 = scmp.lt.s32.totalorder %s547, 3
        %s549 = scalar_select %p548, %s547, 3
        %s550 = smul.addr %s549, 16
        %s551 = smul.addr %s550, 4
        %s552 = scalar_lea.vmem %s6, %s551
        %p553 = pneg %p259
        %p554 = pneg %p256
        %p555 = scmp.lt.s32.totalorder %s41, 3
        %s556 = scalar_select %p555, %s41, 3
        %p557 = scmp.lt.s32.totalorder %s40, 1
        %s558 = scalar_select %p557, %s40, 1
        %s559 = smul.addr %s556, 2
        %s560 = sadd.s32 %s558, %s559
        %s561 = smul.addr %s560, 8
        %s562 = scalar_lea.vmem %s7, %s561
        %p563 = pneg %p287
        %p564 = pneg %p284
        %p565 = pneg %p313
        %p566 = pneg %p310
        %s567 = sand.u32 %s300, 1
        %s568 = scalar_lea.sflag [#allocation7], %s567
        %s569 = sand.u32 %s300, 1
        %s570 = smul.addr %s569, 8
        %s571 = scalar_lea.vmem [#allocation6], %s570
        %p572 = scmp.lt.s32.totalorder %s40, 1
        %s573 = scalar_select %p572, %s40, 1
        %s574 = smul.addr %s573, 4
        %s575 = scalar_lea.vmem %s2, %s574
        %s576 = sshra.s32 %s41, 7
        %s577 = sand.u32 %s41, 127
        %s578 = sadd.s32 %s576, %s40
        %s579 = smul.u32 %s578, 128
        %s580 = sshra.s32 %s41, 7
        %s581 = sand.u32 %s41, 127
        %s582 = sadd.s32 %s579, %s581
        %s583 = sld [smem:[#allocation4 + %s582]]
        %s584 = sld [smem:[#allocation5 + %s40]]
        %p585 = scmp.lt.s32.totalorder %s41, %s584
        %s586 = scalar_select %p585, %s42, 0
        %s587 = smul.u32 2, %s586
        %p588 = scmp.lt.s32.totalorder %s583, 3
        %s589 = scalar_select %p588, %s583, 3
        %p590 = scmp.lt.s32.totalorder %s587, 1
        %s591 = scalar_select %p590, %s587, 1
        %s592 = smul.addr %s589, 8
        %s593 = sadd.s32 %s591, %s592
        %s594 = smul.addr %s593, 4
        %s595 = scalar_lea.vmem %s3, %s594
        %s596 = sshra.s32 %s41, 7
        %s597 = sand.u32 %s41, 127
        %s598 = sadd.s32 %s596, %s40
        %s599 = smul.u32 %s598, 128
        %s600 = sshra.s32 %s41, 7
        %s601 = sand.u32 %s41, 127
        %s602 = sadd.s32 %s599, %s601
        %s603 = sld [smem:[#allocation4 + %s602]]
        %s604 = sld [smem:[#allocation5 + %s40]]
        %p605 = scmp.lt.s32.totalorder %s41, %s604
        %s606 = scalar_select %p605, %s42, 0
        %s607 = smul.u32 2, %s606
        %s608 = sshra.s32 %s41, 7
        %s609 = sand.u32 %s41, 127
        %s610 = sadd.s32 %s608, %s40
        %s611 = smul.u32 %s610, 128
        %s612 = sshra.s32 %s41, 7
        %s613 = sand.u32 %s41, 127
        %s614 = sadd.s32 %s611, %s613
        %s615 = sld [smem:[#allocation4 + %s614]]
        %s616 = sld [smem:[#allocation5 + %s40]]
        %p617 = scmp.lt.s32.totalorder %s41, %s616
        %s618 = scalar_select %p617, %s42, 0
        %s619 = smul.u32 16, %s618
        %p620 = scmp.lt.s32.totalorder %s615, 3
        %s621 = scalar_select %p620, %s615, 3
        %p622 = scmp.lt.s32.totalorder %s619, 15
        %s623 = scalar_select %p622, %s619, 15
        %s624 = smul.addr %s621, 16
        %s625 = sadd.s32 %s623, %s624
        %s626 = smul.addr %s625, 4
        %s627 = scalar_lea.vmem %s4, %s626
        %s628 = sshra.s32 %s41, 7
        %s629 = sand.u32 %s41, 127
        %s630 = sadd.s32 %s628, %s40
        %s631 = smul.u32 %s630, 128
        %s632 = sshra.s32 %s41, 7
        %s633 = sand.u32 %s41, 127
        %s634 = sadd.s32 %s631, %s633
        %s635 = sld [smem:[#allocation4 + %s634]]
        %s636 = sld [smem:[#allocation5 + %s40]]
        %p637 = scmp.lt.s32.totalorder %s41, %s636
        %s638 = scalar_select %p637, %s42, 0
        %s639 = smul.u32 16, %s638
        %s640 = sshra.s32 %s41, 7
        %s641 = sand.u32 %s41, 127
        %s642 = sadd.s32 %s640, %s40
        %s643 = smul.u32 %s642, 128
        %s644 = sshra.s32 %s41, 7
        %s645 = sand.u32 %s41, 127
        %s646 = sadd.s32 %s643, %s645
        %s647 = sld [smem:[#allocation4 + %s646]]
        %p648 = scmp.lt.s32.totalorder %s647, 3
        %s649 = scalar_select %p648, %s647, 3
        %s650 = smul.addr %s649, 4
        %s651 = smul.addr %s650, 4
        %s652 = scalar_lea.vmem %s5, %s651
        %s653 = sshra.s32 %s41, 7
        %s654 = sand.u32 %s41, 127
        %s655 = sadd.s32 %s653, %s40
        %s656 = smul.u32 %s655, 128
        %s657 = sshra.s32 %s41, 7
        %s658 = sand.u32 %s41, 127
        %s659 = sadd.s32 %s656, %s658
        %s660 = sld [smem:[#allocation4 + %s659]]
        %s661 = sshra.s32 %s41, 7
        %s662 = sand.u32 %s41, 127
        %s663 = sadd.s32 %s661, %s40
        %s664 = smul.u32 %s663, 128
        %s665 = sshra.s32 %s41, 7
        %s666 = sand.u32 %s41, 127
        %s667 = sadd.s32 %s664, %s666
        %s668 = sld [smem:[#allocation4 + %s667]]
        %p669 = scmp.lt.s32.totalorder %s668, 3
        %s670 = scalar_select %p669, %s668, 3
        %s671 = smul.addr %s670, 16
        %s672 = smul.addr %s671, 4
        %s673 = scalar_lea.vmem %s6, %s672
        %s674 = sshra.s32 %s41, 7
        %s675 = sand.u32 %s41, 127
        %s676 = sadd.s32 %s674, %s40
        %s677 = smul.u32 %s676, 128
        %s678 = sshra.s32 %s41, 7
        %s679 = sand.u32 %s41, 127
        %s680 = sadd.s32 %s677, %s679
        %s681 = sld [smem:[#allocation4 + %s680]]
        %p682 = scmp.lt.s32.totalorder %s41, 3
        %s683 = scalar_select %p682, %s41, 3
        %p684 = scmp.lt.s32.totalorder %s40, 1
        %s685 = scalar_select %p684, %s40, 1
        %s686 = smul.addr %s683, 2
        %s687 = sadd.s32 %s685, %s686
        %s688 = smul.addr %s687, 8
        %s689 = scalar_lea.vmem %s7, %s688
        %p691 = scmp.eq.s32.totalorder %s41, 0
        %p692 = scmp.eq.s32.totalorder %s42, 0
        %p693 = pnand %p691, %p692
        %p694 = pneg %p693
        // Predicated region
        $region45: #{tpu_custom_call.1} parent=43 // pred_check
          _
        $region46: #{tpu_custom_call.1} parent=43 // pred_check_branch
          %696 = sbr.rel (%p693) target = $region48
        $region47: #{tpu_custom_call.1} parent=43 // pred_region
          %vm697 = vcmask 261120
          %698 = vst.msk [vmem:[#allocation2] sm:$0xff] %vm697, 0.0
        $region48: #{tpu_custom_call.1} parent=43 // pred_fallthru
          _
        %s699 = sld [smem:[#allocation5 + %s40]]
        %p700 = scmp.lt.s32.totalorder %s41, %s699
        // Predicated region
        $region49: #{tpu_custom_call.1} parent=43 // pred_check
          %p701 = pneg %p700
        $region50: #{tpu_custom_call.1} parent=43 // pred_check_branch
          %703 = sbr.rel (%p701) target = $region52
        $region51: #{tpu_custom_call.1} parent=43 // pred_region
          %v704 = vld [vmem:[%s575] sm:$0xf]
          %v705 = vld [vmem:[%s689] sm:$0xff]
          %v706 = vld [vmem:[%s595] sm:$0xff]
          %v707 = vld [vmem:[%s595 + $0x8] sm:$0xff]
          %v708 = vld [vmem:[%s595 + $0x10] sm:$0xff]
          %v709 = vld [vmem:[%s595 + $0x18] sm:$0xff]
          %v714 = vunpack.c.l.b16 %v706
          %v715 = vunpack.c.h.b16 %v706
          %v716 = vunpack.c.l.b16 %v707
          %v717 = vunpack.c.h.b16 %v707
          %v718 = vunpack.c.l.b16 %v708
          %v719 = vunpack.c.h.b16 %v708
          %v720 = vunpack.c.l.b16 %v709
          %v721 = vunpack.c.h.b16 %v709
          %v722 = vpack.c.b16 %v716, %v714
          %v723 = vpack.c.b16 %v717, %v715
          %v724 = vpack.c.b16 %v720, %v718
          %v725 = vpack.c.b16 %v721, %v719
          %vm730 = vcmask 261120
          %v732 = vsel %vm730, %v704, 0
          %734 = vmatpush.bf16.msra.mxu0 0
          %735 = vmatpush.bf16.msra.mxu0 0
          %736 = vmatpush.bf16.msra.mxu0 0
          %737 = vmatpush.bf16.msra.mxu0 0
          %738 = vmatpush.bf16.msra.mxu0 0
          %739 = vmatpush.bf16.msra.mxu0 0
          %740 = vmatpush.bf16.msra.mxu0 %v724
          %741 = vmatpush.bf16.msra.mxu0 %v722
          %742 = vmatmul.bf16.gmra.mxu0 %v732
          %v743 = vpop.f32.mrf.mxu0
          %v744 = vadd.f32 0.0, %v743
          %v745 = vpop.f32.mrf.mxu0
          %746 = vdwg.mxu0
          %747 = vmatpush.bf16.msra.mxu0 0
          %748 = vmatpush.bf16.msra.mxu0 0
          %749 = vmatpush.bf16.msra.mxu0 0
          %750 = vmatpush.bf16.msra.mxu0 0
          %751 = vmatpush.bf16.msra.mxu0 0
          %752 = vmatpush.bf16.msra.mxu0 0
          %753 = vmatpush.bf16.msra.mxu0 %v725
          %754 = vmatpush.bf16.msra.mxu0 %v723
          %755 = vmatmul.bf16.gmra.mxu0 %v732
          %v756 = vpop.f32.mrf.mxu0
          %v757 = vadd.f32 0.0, %v756
          %v758 = vpop.f32.mrf.mxu0
          %759 = vdwg.mxu0
          %v760 = vxor.u32 %v757, 2147483648
          %v761 = vmul.f32 %v760, 1.442695
          %v762 = vpow.pop %v761
          %v763 = vadd.f32 %v762, 1.0
          %v764 = vrcp.pop %v763
          %v765 = vmul.f32 %v763, %v764
          %v766 = vsub.f32 1.0, %v765
          %v767 = vmul.f32 %v764, %v766
          %v768 = vadd.f32 %v764, %v767
          %vm769 = vweird.f32 %v763
          %vm770 = vweird.f32 %v764
          %vm771 = vmor %vm769, %vm770
          %v772 = vsel %vm771, %v764, %v768
          %v773 = vand.u32 2147483647, %v763
          %vm774 = vcmp.eq.f32.partialorder %v773, 8.507059e+37
          %v775 = vand.u32 %v763, 2147483648
          %v776 = vor.u32 1.1754944e-38, %v775
          %v777 = vsel %vm774, %v776, %v772
          %v778 = vmul.f32 1.0, %v777
          %v779 = vmul.f32 %v757, %v778
          %v780 = vmul.f32 %v779, %v744
          %782 = vset.pattern.permute.xlu0 0
          %783 = vperm.xlu0 %782, %v705
          %v784 = vpop.permute.xlu0 %783
          %v786 = vmul.f32 %v780, %v784
          %v787 = vld [vmem:[#allocation2] sm:$0xff]
          %v788 = vpack.c.bf16 %v786, %v786
          %v789 = vld [vmem:[%s627] sm:$0xf]
          %v790 = vld [vmem:[%s627 + $0x4] sm:$0xf]
          %v791 = vld [vmem:[%s627 + $0x8] sm:$0xf]
          %v792 = vld [vmem:[%s627 + $0xc] sm:$0xf]
          %v793 = vld [vmem:[%s627 + $0x10] sm:$0xf]
          %v794 = vld [vmem:[%s627 + $0x14] sm:$0xf]
          %v795 = vld [vmem:[%s627 + $0x18] sm:$0xf]
          %v796 = vld [vmem:[%s627 + $0x1c] sm:$0xf]
          %v797 = vld [vmem:[%s627 + $0x20] sm:$0xf]
          %v798 = vld [vmem:[%s627 + $0x24] sm:$0xf]
          %v799 = vld [vmem:[%s627 + $0x28] sm:$0xf]
          %v800 = vld [vmem:[%s627 + $0x2c] sm:$0xf]
          %v801 = vld [vmem:[%s627 + $0x30] sm:$0xf]
          %v802 = vld [vmem:[%s627 + $0x34] sm:$0xf]
          %v803 = vld [vmem:[%s627 + $0x38] sm:$0xf]
          %v804 = vld [vmem:[%s627 + $0x3c] sm:$0xf]
          %v821 = vunpack.c.l.b16 %v789
          %v822 = vunpack.c.l.b16 %v790
          %v823 = vunpack.c.l.b16 %v791
          %v824 = vunpack.c.l.b16 %v792
          %v825 = vunpack.c.l.b16 %v793
          %v826 = vunpack.c.l.b16 %v794
          %v827 = vunpack.c.l.b16 %v795
          %v828 = vunpack.c.l.b16 %v796
          %v829 = vunpack.c.l.b16 %v797
          %v830 = vunpack.c.l.b16 %v798
          %v831 = vunpack.c.l.b16 %v799
          %v832 = vunpack.c.l.b16 %v800
          %v833 = vunpack.c.l.b16 %v801
          %v834 = vunpack.c.l.b16 %v802
          %v835 = vunpack.c.l.b16 %v803
          %v836 = vunpack.c.l.b16 %v804
          %v837 = vpack.c.b16 %v822, %v821
          %v838 = vpack.c.b16 %v824, %v823
          %v839 = vpack.c.b16 %v826, %v825
          %v840 = vpack.c.b16 %v828, %v827
          %v841 = vpack.c.b16 %v830, %v829
          %v842 = vpack.c.b16 %v832, %v831
          %v843 = vpack.c.b16 %v834, %v833
          %v844 = vpack.c.b16 %v836, %v835
          %853 = vmatpush.bf16.msra.mxu0 %v844
          %854 = vmatpush.bf16.msra.mxu0 %v843
          %855 = vmatpush.bf16.msra.mxu0 %v842
          %856 = vmatpush.bf16.msra.mxu0 %v841
          %857 = vmatpush.bf16.msra.mxu0 %v840
          %858 = vmatpush.bf16.msra.mxu0 %v839
          %859 = vmatpush.bf16.msra.mxu0 %v838
          %860 = vmatpush.bf16.msra.mxu0 %v837
          %861 = vmatmul.bf16.gmra.mxu0 %v788
          %v862 = vpop.f32.mrf.mxu0
          %v863 = vadd.f32 0.0, %v862
          %v864 = vpop.f32.mrf.mxu0
          %865 = vdwg.mxu0
          %v866 = vadd.f32 %v787, %v863
          %867 = vst.msk [vmem:[#allocation2] sm:$0xff] %vm730, %v866
          // Predicated region
          $region53: #{tpu_custom_call.1} parent=51 // pred_check
            %p868 = pneg %p692
          $region54: #{tpu_custom_call.1} parent=51 // pred_check_branch
            %870 = sbr.rel (%p868) target = $region56
          $region55: #{tpu_custom_call.1} parent=51 // pred_region
            %v871 = vld [vmem:[%s652] sm:$0xf]
            %v872 = vld [vmem:[%s652 + $0x4] sm:$0xf]
            %v873 = vld [vmem:[%s652 + $0x8] sm:$0xf]
            %v874 = vld [vmem:[%s652 + $0xc] sm:$0xf]
            %v879 = vunpack.c.l.b16 %v871
            %v880 = vunpack.c.l.b16 %v872
            %v881 = vunpack.c.l.b16 %v873
            %v882 = vunpack.c.l.b16 %v874
            %v883 = vpack.c.b16 %v880, %v879
            %v884 = vpack.c.b16 %v882, %v881
            %887 = vmatpush.bf16.msra.mxu0 0
            %888 = vmatpush.bf16.msra.mxu0 0
            %889 = vmatpush.bf16.msra.mxu0 0
            %890 = vmatpush.bf16.msra.mxu0 0
            %891 = vmatpush.bf16.msra.mxu0 0
            %892 = vmatpush.bf16.msra.mxu0 0
            %893 = vmatpush.bf16.msra.mxu0 %v884
            %894 = vmatpush.bf16.msra.mxu0 %v883
            %895 = vmatmul.bf16.gmra.mxu0 %v732
            %v896 = vpop.f32.mrf.mxu0
            %v897 = vadd.f32 0.0, %v896
            %v898 = vpop.f32.mrf.mxu0
            %899 = vdwg.mxu0
            %v900 = vmul.f32 %v897, %v784
            %v901 = vld [vmem:[#allocation2] sm:$0xff]
            %v902 = vpack.c.bf16 %v900, %v900
            %v903 = vld [vmem:[%s673] sm:$0xf]
            %v904 = vld [vmem:[%s673 + $0x4] sm:$0xf]
            %v905 = vld [vmem:[%s673 + $0x8] sm:$0xf]
            %v906 = vld [vmem:[%s673 + $0xc] sm:$0xf]
            %v907 = vld [vmem:[%s673 + $0x10] sm:$0xf]
            %v908 = vld [vmem:[%s673 + $0x14] sm:$0xf]
            %v909 = vld [vmem:[%s673 + $0x18] sm:$0xf]
            %v910 = vld [vmem:[%s673 + $0x1c] sm:$0xf]
            %v911 = vld [vmem:[%s673 + $0x20] sm:$0xf]
            %v912 = vld [vmem:[%s673 + $0x24] sm:$0xf]
            %v913 = vld [vmem:[%s673 + $0x28] sm:$0xf]
            %v914 = vld [vmem:[%s673 + $0x2c] sm:$0xf]
            %v915 = vld [vmem:[%s673 + $0x30] sm:$0xf]
            %v916 = vld [vmem:[%s673 + $0x34] sm:$0xf]
            %v917 = vld [vmem:[%s673 + $0x38] sm:$0xf]
            %v918 = vld [vmem:[%s673 + $0x3c] sm:$0xf]
            %v935 = vunpack.c.l.b16 %v903
            %v936 = vunpack.c.l.b16 %v904
            %v937 = vunpack.c.l.b16 %v905
            %v938 = vunpack.c.l.b16 %v906
            %v939 = vunpack.c.l.b16 %v907
            %v940 = vunpack.c.l.b16 %v908
            %v941 = vunpack.c.l.b16 %v909
            %v942 = vunpack.c.l.b16 %v910
            %v943 = vunpack.c.l.b16 %v911
            %v944 = vunpack.c.l.b16 %v912
            %v945 = vunpack.c.l.b16 %v913
            %v946 = vunpack.c.l.b16 %v914
            %v947 = vunpack.c.l.b16 %v915
            %v948 = vunpack.c.l.b16 %v916
            %v949 = vunpack.c.l.b16 %v917
            %v950 = vunpack.c.l.b16 %v918
            %v951 = vpack.c.b16 %v936, %v935
            %v952 = vpack.c.b16 %v938, %v937
            %v953 = vpack.c.b16 %v940, %v939
            %v954 = vpack.c.b16 %v942, %v941
            %v955 = vpack.c.b16 %v944, %v943
            %v956 = vpack.c.b16 %v946, %v945
            %v957 = vpack.c.b16 %v948, %v947
            %v958 = vpack.c.b16 %v950, %v949
            %967 = vmatpush.bf16.msra.mxu0 %v958
            %968 = vmatpush.bf16.msra.mxu0 %v957
            %969 = vmatpush.bf16.msra.mxu0 %v956
            %970 = vmatpush.bf16.msra.mxu0 %v955
            %971 = vmatpush.bf16.msra.mxu0 %v954
            %972 = vmatpush.bf16.msra.mxu0 %v953
            %973 = vmatpush.bf16.msra.mxu0 %v952
            %974 = vmatpush.bf16.msra.mxu0 %v951
            %975 = vmatmul.bf16.gmra.mxu0 %v902
            %v976 = vpop.f32.mrf.mxu0
            %v977 = vadd.f32 0.0, %v976
            %v978 = vpop.f32.mrf.mxu0
            %979 = vdwg.mxu0
            %v980 = vadd.f32 %v901, %v977
            %981 = vst.msk [vmem:[#allocation2] sm:$0xff] %vm730, %v980
          $region56: #{tpu_custom_call.1} parent=51 // pred_fallthru
            _
        $region52: #{tpu_custom_call.1} parent=43 // pred_fallthru
          _
        %p982 = scmp.eq.s32.totalorder %s41, 3
        %p983 = pnand %p982, %p692
        %p984 = pneg %p983
        // Predicated region
        $region57: #{tpu_custom_call.1} parent=43 // pred_check
          _
        $region58: #{tpu_custom_call.1} parent=43 // pred_check_branch
          %986 = sbr.rel (%p983) target = $region60
        $region59: #{tpu_custom_call.1} parent=43 // pred_region
          %v987 = vld [vmem:[#allocation2] sm:$0xff]
          %vm988 = vcmask 261120
          %989 = vst.msk [vmem:[%s571] sm:$0xff] %vm988, %v987
        $region60: #{tpu_custom_call.1} parent=43 // pred_fallthru
          _
        %s990 = sand.u32 %s300, 1
        %s991 = scalar_lea.sflag [#allocation7], %s990
        %s992 = sand.u32 %s300, 1
        %s993 = smul.addr %s992, 8
        %s994 = scalar_lea.vmem [#allocation6], %s993
        // Predicated region
        $region61: #{tpu_custom_call.1} parent=43 // pred_check
          %p995 = pneg %p310
        $region62: #{tpu_custom_call.1} parent=43 // pred_check_branch
          %997 = sbr.rel (%p995) target = $region64
        $region63: #{tpu_custom_call.1} parent=43 // pred_region
          %999 = vsyncadd %s991, 0
          %s1000 = smul.addr %s40, 8
          %s1001 = scalar_lea.hbm %s8, %s1000
          %s1003 = sshll.u32 %s994, 4
          %s1004 = int_to_ptr.vmem [resolvable:$true] %s1003
          %s1005 = sshll.u32 %s1001, 4
          %s1006 = int_to_ptr.hbm [resolvable:$true] %s1005
          %1008 = dma.vmem_to_hbm [thread:$0]  %s1004, 128, %s1006, %s991
        $region64: #{tpu_custom_call.1} parent=43 // pred_fallthru
          _
      $region44: #{tpu_custom_call.1} parent=5 // pred_fallthru
        _
      %p1009 = scmp.le.s32.totalorder 2, %s30
      // Predicated region
      $region65: #{tpu_custom_call.1} parent=5 // pred_check
        %p1010 = pneg %p1009
      $region66: #{tpu_custom_call.1} parent=5 // pred_check_branch
        %1012 = sbr.rel (%p1010) target = $region68
      $region67: #{tpu_custom_call.1} parent=5 // pred_region
        %s1013 = ssub.s32 %s30, 2
        // Predicated region
        $region69: #{tpu_custom_call.1} parent=67 // pred_check
          %p1014 = pneg %p316
        $region70: #{tpu_custom_call.1} parent=67 // pred_check_branch
          %1016 = sbr.rel (%p1014) target = $region72
        $region71: #{tpu_custom_call.1} parent=67 // pred_region
          %s1017 = sand.u32 %s301, 1
          %s1018 = scalar_lea.sflag [#allocation7], %s1017
          %s1019 = sand.u32 %s301, 1
          %s1020 = smul.addr %s1019, 8
          %s1021 = scalar_lea.vmem [#allocation6], %s1020
          %1023 = dma.done %s1018, 128
        $region72: #{tpu_custom_call.1} parent=67 // pred_fallthru
          _
      $region68: #{tpu_custom_call.1} parent=5 // pred_fallthru
        _
    $region6: #{tpu_custom_call.1} parent=1 // loop_footer
      %s34 = sadd.s32 1, %s30
    $region7: #{tpu_custom_call.1} parent=1 // loop_footer_branch
      %29 = sbr.rel target = $region3
    $region8: #{tpu_custom_call.1} parent=1 // loop_exit
      _
    %1024 = vsyncpa [#allocation7], 1
    %s1025 = scalar_lea.sflag [#allocation7], 1
    %1026 = vsyncpa %s1025, 1

</llo_original>
